<compile_context>
chip_gen: v5e
topology: v5e:2x2
jax: 0.10.0
libtpu: 0.0.40
codegen_flags: <defaults>
</compile_context>

<pallas_src>
import jax
import jax.numpy as jnp
import numpy as np
from jax.experimental import pallas as pl
from jax.experimental.pallas import tpu as pltpu


def _pick_tile(total, target):
    """Largest multiple of 128 that divides `total` and is <= target."""
    assert total % 128 == 0, "H*W must be a multiple of 128 for this demo kernel"
    t = min(target, total)
    t -= t % 128
    while total % t != 0:
        t -= 128
    return t


# ----------------------------------------------------------------------------
# Pallas kernel 1: 1x1 convolution (K / V projections), lane-dense layout
#   (Cout, Cin) @ (Cin, hw_tile) -> (Cout, hw_tile)
# ----------------------------------------------------------------------------
def _conv1x1_kernel(w_ref, x_ref, o_ref):
    o_ref[...] = jnp.dot(
        w_ref[...], x_ref[...], preferred_element_type=jnp.float32
    ).astype(o_ref.dtype)


def conv1x1(x_nchw, weight, out_dtype=jnp.float32, tile_target=2048):
    """x: (n, cin, h, w) f32, weight: (cout, cin) f32 -> (n, cout, h, w) out_dtype."""
    n, cin, h, w = x_nchw.shape
    cout = weight.shape[0]
    hw = h * w
    t = _pick_tile(hw, tile_target)
    x2d = x_nchw.reshape(n, cin, hw)  # free (contiguous)

    out = pl.pallas_call(
        _conv1x1_kernel,
        out_shape=jax.ShapeDtypeStruct((n, cout, hw), out_dtype),
        grid_spec=pltpu.PrefetchScalarGridSpec(
            num_scalar_prefetch=0,
            grid=(n, hw // t),
            in_specs=[
                pl.BlockSpec((cout, cin), lambda b, i: (0, 0)),
                pl.BlockSpec((None, cin, t), lambda b, i: (b, 0, i)),
            ],
            out_specs=pl.BlockSpec((None, cout, t), lambda b, i: (b, 0, i)),
        ),
        compiler_params=pltpu.CompilerParams(
            dimension_semantics=("parallel", "parallel"),
        ),
    )(weight, x2d)
    return out.reshape(n, cout, h, w)


# ----------------------------------------------------------------------------
# Pallas kernel 2: fused q-projection + per-pixel softmax attention over P
# sampled slots + fc projection.
#   wq : (nh*dk, feat_dim) f32 (pre-scaled by 1/sqrt(dk))
#   x  : (feat_dim, T) f32 (raw query pixels)
#   k  : (P, nh, dk, T) bf16      v : (P, nh, dv, T) bf16
#   fc : (feat_dim, nh*dv) f32
#   out: (feat_dim, T) f32        attn: (P, nh, T) f32  (compute-native layout)
# ----------------------------------------------------------------------------
def _attn_fused_kernel(wq_ref, x_ref, k_ref, v_ref, fc_ref, o_ref, a_ref):
    P, nh, dk, T = k_ref.shape
    dv = v_ref.shape[2]

    # Fused q projection (MXU); weight is pre-scaled by 1/sqrt(dk).
    q = jnp.dot(wq_ref[...], x_ref[...], preferred_element_type=jnp.float32)
    q = q.reshape(nh, dk, T)                         # free sublane re-tile (8 | nh*dk)

    k = k_ref[...].astype(jnp.float32)               # (P, nh, dk, T)
    v = v_ref[...].astype(jnp.float32)               # (P, nh, dv, T)

    logits = jnp.sum(q[None, :, :, :] * k, axis=2)   # (P, nh, T)
    m = jnp.max(logits, axis=0, keepdims=True)
    e = jnp.exp(logits - m)
    s = jnp.sum(e, axis=0, keepdims=True)
    inv = 1.0 / s                                    # one reciprocal per (nh, T)
    attn = e * inv                                   # (P, nh, T)

    ctx = jnp.sum(attn[:, :, None, :] * v, axis=0)   # (nh, dv, T) f32
    # fused fc (1x1 conv): (feat_dim, nh*dv) @ (nh*dv, T) -> (feat_dim, T)
    o_ref[...] = jnp.dot(
        fc_ref[...], ctx.reshape(nh * dv, T), preferred_element_type=jnp.float32
    )
    a_ref[...] = attn                                # no in-kernel transpose


def deformable_attention_fused(x_q, wq_scaled, k_s, v_s, fc_w, feat_dim,
                               tile_target=512):
    """x_q: (n, feat_dim, hw) f32; wq_scaled: (nh*dk, feat_dim) f32;
       k_s/v_s: (n, P, nh, d, hw) bf16; fc_w: (feat_dim, nh*dv) f32."""
    n, cin, hw = x_q.shape
    P, nh, dk = k_s.shape[1], k_s.shape[2], k_s.shape[3]
    dv = v_s.shape[3]
    t = _pick_tile(hw, tile_target)

    out, attn = pl.pallas_call(
        _attn_fused_kernel,
        out_shape=(
            jax.ShapeDtypeStruct((n, feat_dim, hw), jnp.float32),
            jax.ShapeDtypeStruct((n, P, nh, hw), jnp.float32),
        ),
        grid_spec=pltpu.PrefetchScalarGridSpec(
            num_scalar_prefetch=0,
            grid=(n, hw // t),
            in_specs=[
                pl.BlockSpec((nh * dk, cin), lambda b, i: (0, 0)),
                pl.BlockSpec((None, cin, t), lambda b, i: (b, 0, i)),
                pl.BlockSpec((None, P, nh, dk, t), lambda b, i: (b, 0, 0, 0, i)),
                pl.BlockSpec((None, P, nh, dv, t), lambda b, i: (b, 0, 0, 0, i)),
                pl.BlockSpec((feat_dim, nh * dv), lambda b, i: (0, 0)),
            ],
            out_specs=(
                pl.BlockSpec((None, feat_dim, t), lambda b, i: (b, 0, i)),
                pl.BlockSpec((None, P, nh, t), lambda b, i: (b, 0, 0, i)),
            ),
        ),
        compiler_params=pltpu.CompilerParams(
            dimension_semantics=("parallel", "parallel"),
            # Above the 16 MiB v5e scoped default, safely below every generation's
            # physical VMEM (64/128 MiB); per-step usage at tile<=512 is < 12 MiB.
            vmem_limit_bytes=32 * 1024 * 1024,
        ),
    )(wq_scaled, x_q, k_s, v_s, fc_w)
    return out, attn


# ----------------------------------------------------------------------------
# JAX glue: deformation_grid + deformation_aware_sampler
# (bilinear grid_sample, zeros padding, align_corners=True)
# Coordinate / weight math is always f32; output matches feat dtype (bf16 for K/V).
# TODO(synk): data-dependent bilinear gather has no clean Pallas TPU equivalent here;
#             implemented with plain-JAX take_along_axis.
# ----------------------------------------------------------------------------
def deformation_sample(feat, deform_field, p_size):
    """feat: (n, c, h, w); deform_field: (n, 2, h, w) -> (n, P, c, h, w) feat.dtype."""
    n, c, h, w = feat.shape
    P = p_size * p_size
    pad = (p_size - 1) // 2
    f32 = jnp.float32

    shift = jnp.arange(p_size, dtype=f32) - pad
    shift_y = jnp.repeat(shift, p_size)     # shift[p // p_size]
    shift_x = jnp.tile(shift, p_size)       # shift[p %  p_size]

    base_y = jnp.arange(h, dtype=f32)
    base_x = jnp.arange(w, dtype=f32)
    sy = base_y[None, :, None] + shift_y[:, None, None]          # (P, h, w)
    sx = base_x[None, None, :] + shift_x[:, None, None]          # (P, h, w)

    df = deform_field.astype(f32)
    xs = sx[None] + df[:, 0][:, None]                            # (n, P, h, w)
    ys = sy[None] + df[:, 1][:, None]

    x0 = jnp.floor(xs)
    y0 = jnp.floor(ys)
    x1 = x0 + 1.0
    y1 = y0 + 1.0
    wx1 = xs - x0
    wx0 = 1.0 - wx1
    wy1 = ys - y0
    wy0 = 1.0 - wy1

    feat_flat = feat.reshape(n, c, h * w)

    def corner(xi, yi, wgt):
        valid = ((xi >= 0) & (xi <= w - 1) & (yi >= 0) & (yi <= h - 1)).astype(f32)
        xc = jnp.clip(xi, 0, w - 1).astype(jnp.int32)
        yc = jnp.clip(yi, 0, h - 1).astype(jnp.int32)
        idx = (yc * w + xc).reshape(n, 1, P * h * w)
        vals = jnp.take_along_axis(
            feat_flat, jnp.broadcast_to(idx, (n, c, P * h * w)), axis=2
        ).astype(f32).reshape(n, c, P, h, w)
        return vals * (valid * wgt)[:, None]

    out = (
        corner(x0, y0, wx0 * wy0)
        + corner(x1, y0, wx1 * wy0)
        + corner(x0, y1, wx0 * wy1)
        + corner(x1, y1, wx1 * wy1)
    )
    return out.transpose(0, 2, 1, 3, 4).astype(feat.dtype)  # (n, P, c, h, w)


# ----------------------------------------------------------------------------
# Module wrapper
# ----------------------------------------------------------------------------
class MultiHeadAttentionPallas:
    def __init__(self, feat_dim, num_head, p_size=5, d_k=None, d_v=None, key=None):
        if d_k is None:
            d_k = feat_dim // num_head
        if d_v is None:
            d_v = feat_dim // num_head
        self.feat_dim = feat_dim
        self.num_head = num_head
        self.p_size = p_size
        self.d_k = d_k
        self.d_v = d_v

        k1, k2, k3, k4 = jax.random.split(key, 4)

        def init_w(k, cout, cin):
            bound = 1.0 / np.sqrt(cin)
            return jax.random.uniform(k, (cout, cin), jnp.float32, -bound, bound)

        self.w_q = init_w(k1, num_head * d_k, feat_dim)
        self.w_k = init_w(k2, num_head * d_k, feat_dim)
        self.w_v = init_w(k3, num_head * d_v, feat_dim)
        self.fc = init_w(k4, feat_dim, num_head * d_v)

    def __call__(self, query, key, value, deform_field):
        nh, dk, dv = self.num_head, self.d_k, self.d_v
        P = self.p_size ** 2

        # K/V projections emitted directly in bf16: halves the HBM bytes of the
        # 25x-expanded sampled tensors that dominate traffic.
        k = conv1x1(key, self.w_k, out_dtype=jnp.bfloat16)
        v = conv1x1(value, self.w_v, out_dtype=jnp.bfloat16)
        n, _, h, w = k.shape
        hw = h * w

        sk = deformation_sample(k, deform_field, self.p_size)        # (n, P, nh*dk, h, w) bf16
        sv = deformation_sample(v, deform_field, self.p_size)        # (n, P, nh*dv, h, w) bf16

        # Pure reshapes (no relayout): pixel axis stays last.
        q_in = query.reshape(n, self.feat_dim, hw)
        k_l = sk.reshape(n, P, nh, dk, hw)
        v_l = sv.reshape(n, P, nh, dv, hw)

        # Fold 1/sqrt(d_k) into the fused query-projection weight (free).
        wq_scaled = self.w_q * (1.0 / float(np.sqrt(dk)))

        out2d, attn_l = deformable_attention_fused(
            q_in, wq_scaled, k_l, v_l, self.fc, self.feat_dim
        )

        out = out2d.reshape(n, self.feat_dim, h, w)                  # already NCHW
        # Single XLA permute of attn to the PyTorch layout (n, nh, P, h, w).
        attn = attn_l.reshape(n, P, nh, h, w).transpose(0, 2, 1, 3, 4)
        return out, attn


# ----------------------------------------------------------------------------
# Pure-JAX reference (mirrors the PyTorch forward, full f32) for correctness checking
# ----------------------------------------------------------------------------
def reference_forward(mha, query, key, value, deform_field):
    nh, dk, dv = mha.num_head, mha.d_k, mha.d_v
    P = mha.p_size ** 2
    hp = jax.lax.Precision.HIGHEST

    def c1x1(x, wmat):
        return jnp.einsum("nchw,oc->nohw", x, wmat, precision=hp)

    q = c1x1(query, mha.w_q)
    k = c1x1(key, mha.w_k)
    v = c1x1(value, mha.w_v)
    n, _, h, w = q.shape
    sk = deformation_sample(k, deform_field, mha.p_size)
    sv = deformation_sample(v, deform_field, mha.p_size)

    qh = q.reshape(n, nh, dk, h, w)
    kh = sk.reshape(n, P, nh, dk, h, w)
    vh = sv.reshape(n, P, nh, dv, h, w)

    logits = jnp.einsum("nadhw,npadhw->naphw", qh, kh, precision=hp) / jnp.sqrt(
        jnp.float32(dk)
    )
    attn = jax.nn.softmax(logits, axis=2)
    out = jnp.einsum("naphw,npadhw->nadhw", attn, vh, precision=hp)
    out = out.reshape(n, nh * dv, h, w)
    out = c1x1(out, mha.fc)
    return out, attn


# ----------------------------------------------------------------------------
if __name__ == "__main__":
    feat_dim, num_head, p_size = 32, 4, 5
    n, h, w = 2, 16, 16

    key0 = jax.random.PRNGKey(0)
    kq, kk, kv, kd, kp = jax.random.split(key0, 5)
    query = jax.random.normal(kq, (n, feat_dim, h, w), jnp.float32)
    key_in = jax.random.normal(kk, (n, feat_dim, h, w), jnp.float32)
    value = jax.random.normal(kv, (n, feat_dim, h, w), jnp.float32)
    deform_field = jax.random.uniform(kd, (n, 2, h, w), jnp.float32, -2.0, 2.0)

    mha = MultiHeadAttentionPallas(feat_dim, num_head, p_size, key=kp)

    out, attn = mha(query, key_in, value, deform_field)
    out, attn = jax.block_until_ready((out, attn))

    assert out.shape == (n, feat_dim, h, w)
    assert attn.shape == (n, num_head, p_size ** 2, h, w)

    out_ref, attn_ref = reference_forward(mha, query, key_in, value, deform_field)
    # bf16 K/V path + default MXU precision -> slightly looser tolerance than f32/HIGHEST.
    np.testing.assert_allclose(np.asarray(out), np.asarray(out_ref), atol=2e-2, rtol=2e-2)
    np.testing.assert_allclose(np.asarray(attn), np.asarray(attn_ref), atol=2e-2, rtol=2e-2)

    print("KERNEL_OK")
</pallas_src>

<mosaic_0001>
module attributes {stable_mosaic.version = 11 : i64} {
  func.func @_conv1x1_kernel(%arg0: i32, %arg1: i32, %arg2: memref<32x32xf32, #tpu.memory_space<vmem>>, %arg3: memref<1x32x256xf32, #tpu.memory_space<vmem>>, %arg4: memref<1x32x256xbf16, #tpu.memory_space<vmem>>) attributes {dimension_semantics = [#tpu.dimension_semantics<parallel>, #tpu.dimension_semantics<parallel>], iteration_bounds = array<i64: 2, 1>, scalar_prefetch = 0 : i64, scratch_operands = 0 : i64, tpu.core_type = #tpu.core_type<tc>, window_params = [{pipeline_mode = #tpu.pipeline_mode<synchronous>, transform_indices = @transform_0, window_bounds = array<i64: 32, 32>}, {transform_indices = @transform_1, window_bounds = array<i64: 1, 32, 256>}, {transform_indices = @transform_2, window_bounds = array<i64: 1, 32, 256>}]} {
    %c0 = arith.constant 0 : index
    %c0_0 = arith.constant 0 : index
    %0 = vector.load %arg2[%c0, %c0_0] : memref<32x32xf32, #tpu.memory_space<vmem>>, vector<32x32xf32>
    %c0_1 = arith.constant 0 : index
    %c0_2 = arith.constant 0 : index
    %c0_3 = arith.constant 0 : index
    %1 = vector.load %arg3[%c0_1, %c0_2, %c0_3] : memref<1x32x256xf32, #tpu.memory_space<vmem>>, vector<1x32x256xf32>
    %2 = vector.shape_cast %1 : vector<1x32x256xf32> to vector<32x256xf32>
    %cst = arith.constant dense<0.000000e+00> : vector<32x256xf32>
    %3 = tpu.matmul %0, %2, %cst {dimension_numbers = #tpu.dot_dimension_numbers<[1], [0], [0], [1], [0, 0, 1, 1], [], []>} : vector<32x32xf32>, vector<32x256xf32>, vector<32x256xf32> -> vector<32x256xf32>
    %4 = arith.truncf %3 : vector<32x256xf32> to vector<32x256xbf16>
    %c0_4 = arith.constant 0 : index
    %c0_5 = arith.constant 0 : index
    %c0_6 = arith.constant 0 : index
    %5 = vector.load %arg4[%c0_4, %c0_5, %c0_6] : memref<1x32x256xbf16, #tpu.memory_space<vmem>>, vector<1x32x256xbf16>
    %6 = vector.shape_cast %5 : vector<1x32x256xbf16> to vector<32x256xbf16>
    %7 = vector.shape_cast %4 : vector<32x256xbf16> to vector<1x32x256xbf16>
    tpu.vector_store %arg4[%c0_4, %c0_5, %c0_6], %7 {strides = array<i32>} : memref<1x32x256xbf16, #tpu.memory_space<vmem>>, vector<1x32x256xbf16>,
    return
  }
  func.func @transform_0(%arg0: i32, %arg1: i32) -> (i32, i32) {
    %c0_i32 = arith.constant 0 : i32
    %c0_i32_0 = arith.constant 0 : i32
    %c0_i32_1 = arith.constant 0 : i32
    return %c0_i32, %c0_i32_0 : i32, i32
  }
  func.func @transform_1(%arg0: i32, %arg1: i32) -> (i32, i32, i32) {
    %c0_i32 = arith.constant 0 : i32
    %c0_i32_0 = arith.constant 0 : i32
    return %arg0, %c0_i32, %arg1 : i32, i32, i32
  }
  func.func @transform_2(%arg0: i32, %arg1: i32) -> (i32, i32, i32) {
    %c0_i32 = arith.constant 0 : i32
    %c0_i32_0 = arith.constant 0 : i32
    return %arg0, %c0_i32, %arg1 : i32, i32, i32
  }
}

</mosaic_0001>

<llo_original>
// kernel: tpu_custom_call.1
$region0: #{tpu_custom_call.1}
  #allocation0 [shape = 'u32[]', space=smem, size = 0x4, offset = 0x4, fixed_abs, tag = 'smem constant byte address 0x4 - core index']
  #allocation1 [shape = 'u32[72,128]{1,0:T(1,128)}', space=vmem, size = 0x9000, scoped, tag = 'internal scratch']
  %s0 = inlined_call_operand.hbm [shape: f32[32,32], index: 0, kind: input, shape index: {}]
  %s1 = inlined_call_operand.hbm [shape: f32[2,32,256], index: 1, kind: input, shape index: {}]
  %s2 = inlined_call_operand.hbm [shape: bf16[2,32,256], index: 2, kind: output, shape index: {}]
  %s3 = sld [smem:[#allocation0]]
  $region49: #{tpu_custom_call.1} parent=0
    _
  %s5 = ssub.s32 1, %s3
  %s6 = scalar_select 0, %s5, %s3
  $region1: #{tpu_custom_call.1} parent=0
    #allocation2 [shape = 'u8[16384]{0}', space=vmem, size = 0x4000, scoped, tag = 'input window, operand 0, single buffered']
    #allocation3 [shape = 's32[2]{0}', space=sflag, size = 0x8, scoped, tag = 'scoped memory for tpu_custom_call.1']
    #allocation4 [shape = 's32[2]{0}', space=sflag, size = 0x8, scoped, tag = 'scoped memory for tpu_custom_call.1']
    #allocation5 [shape = 'u8[65536]{0}', space=vmem, size = 0x10000, scoped, tag = 'input window, operand 1']
    #allocation6 [shape = 's32[2]{0}', space=sflag, size = 0x8, scoped, tag = 'scoped memory for tpu_custom_call.1']
    #allocation7 [shape = 'u8[32768]{0}', space=vmem, size = 0x8000, scoped, tag = 'output window, operand 0']
    %7 = vsyncpa [#allocation3], 0
    %8 = vsyncpa [#allocation6], 0
    %s9 = scalar_lea.sflag [#allocation6], 1
    %10 = vsyncpa %s9, 0
    %11 = vsyncpa [#allocation4], 0
    %s12 = scalar_lea.sflag [#allocation4], 1
    %13 = vsyncpa %s12, 0
    loop: start=0, step=1, limit=4
    $region2: #{tpu_custom_call.1} parent=1 // loop_pre_header
      _
    $region3: #{tpu_custom_call.1} parent=1 // loop_header
      %s15 = sphi 0, %s19
      %p16 = scmp.ge.s32.totalorder %s15, 4
      %s22 = sphi 0, %s34
      %s23 = sphi 0, %s30
      %s24 = sphi 0, %s22
      %s25 = sphi 0, %s23
      %s26 = sphi 0, %s24
      %s27 = sphi 0, %s25
      %s35 = sphi 0, %s35
      %s37 = sphi 0, %s35
      %s38 = sphi 0, %s37
      %s52 = sphi 0, %s38
      %s60 = sphi 0, %s62
      %s63 = sphi 0, %s60
      %s64 = sphi 0, %s63
      %s80 = sphi 0, %s64
      %s88 = sphi 0, %s90
      %s91 = sphi 0, %s88
      %s92 = sphi 0, %s91
      %s108 = sphi 0, %s92
    $region4: #{tpu_custom_call.1} parent=1 // loop_header_branch
      %18 = sbr.rel (%p16) target = $region8
    $region5: #{tpu_custom_call.1} parent=1 // loop_body
      %s20 = ssub.s32 %s15, 1
      %s21 = ssub.s32 %s15, 2
      %s28 = sadd.s32 1, %s23
      %p29 = scmp.ge.s32.totalorder %s28, 1
      %s30 = scalar_select %p29, 0, %s28
      %s31 = sadd.s32 1, %s22
      %s32 = scalar_select %p29, %s31, %s22
      %p33 = scmp.ge.s32.totalorder %s32, 2
      %s34 = scalar_select %p33, 0, %s32
      %s36 = sadd.s32 %s35, 1
      %p39 = scmp.eq.s32.totalorder %s15, 1
      %p40 = scmp.ne.s32.totalorder %s35, %s37
      %p41 = scmp.eq.s32.totalorder %s15, 0
      %p42 = por %p40, %p41
      %p43 = scmp.ne.s32.totalorder %s35, %s37
      %p44 = scmp.eq.s32.totalorder %s20, 1
      %p45 = por %p43, %p44
      %p46 = scmp.ne.s32.totalorder %s37, %s38
      %p47 = scmp.eq.s32.totalorder %s20, 0
      %p48 = por %p46, %p47
      %p49 = scmp.ne.s32.totalorder %s37, %s38
      %p50 = scmp.eq.s32.totalorder %s21, 1
      %p51 = por %p49, %p50
      %p53 = scmp.ne.s32.totalorder %s38, %s52
      %p54 = scmp.eq.s32.totalorder %s21, 0
      %p55 = por %p53, %p54
      %s56 = ssub.s32 %s22, %s34
      %s57 = ssub.s32 %s23, %s30
      %s58 = sor.u32 %s56, %s57
      %p59 = scmp.eq.s32.totalorder %s58, 0
      %s61 = sadd.s32 %s60, 1
      %s62 = scalar_select %p59, %s60, %s61
      %p65 = pneg %p59
      %p66 = scmp.eq.s32.totalorder %s15, 1
      %p67 = por %p65, %p66
      %p68 = scmp.ne.s32.totalorder %s60, %s63
      %p69 = scmp.eq.s32.totalorder %s15, 0
      %p70 = por %p68, %p69
      %p71 = scmp.ne.s32.totalorder %s60, %s63
      %p72 = scmp.eq.s32.totalorder %s20, 1
      %p73 = por %p71, %p72
      %p74 = scmp.ne.s32.totalorder %s63, %s64
      %p75 = scmp.eq.s32.totalorder %s20, 0
      %p76 = por %p74, %p75
      %p77 = scmp.ne.s32.totalorder %s63, %s64
      %p78 = scmp.eq.s32.totalorder %s21, 1
      %p79 = por %p77, %p78
      %p81 = scmp.ne.s32.totalorder %s64, %s80
      %p82 = scmp.eq.s32.totalorder %s21, 0
      %p83 = por %p81, %p82
      %s84 = ssub.s32 %s22, %s34
      %s85 = ssub.s32 %s23, %s30
      %s86 = sor.u32 %s84, %s85
      %p87 = scmp.eq.s32.totalorder %s86, 0
      %s89 = sadd.s32 %s88, 1
      %s90 = scalar_select %p87, %s88, %s89
      %p93 = pneg %p87
      %p94 = scmp.eq.s32.totalorder %s15, 1
      %p95 = por %p93, %p94
      %p96 = scmp.ne.s32.totalorder %s88, %s91
      %p97 = scmp.eq.s32.totalorder %s15, 0
      %p98 = por %p96, %p97
      %p99 = scmp.ne.s32.totalorder %s88, %s91
      %p100 = scmp.eq.s32.totalorder %s20, 1
      %p101 = por %p99, %p100
      %p102 = scmp.ne.s32.totalorder %s91, %s92
      %p103 = scmp.eq.s32.totalorder %s20, 0
      %p104 = por %p102, %p103
      %p105 = scmp.ne.s32.totalorder %s91, %s92
      %p106 = scmp.eq.s32.totalorder %s21, 1
      %p107 = por %p105, %p106
      %p109 = scmp.ne.s32.totalorder %s92, %s108
      %p110 = scmp.eq.s32.totalorder %s21, 0
      %p111 = por %p109, %p110
      %p112 = scmp.le.s32.totalorder 1, %s15
      %p113 = scmp.lt.s32.totalorder %s15, 3
      %p114 = pnand %p112, %p113
      %p115 = pneg %p114
      // Predicated region
      $region9: #{tpu_custom_call.1} parent=5 // pred_check
        _
      $region10: #{tpu_custom_call.1} parent=5 // pred_check_branch
        %117 = sbr.rel (%p114) target = $region12
      $region11: #{tpu_custom_call.1} parent=5 // pred_region
        %s118 = ssub.s32 %s15, 1
        // Predicated region
        $region13: #{tpu_custom_call.1} parent=11 // pred_check
          %p119 = pneg %p48
        $region14: #{tpu_custom_call.1} parent=11 // pred_check_branch
          %121 = sbr.rel (%p119) target = $region16
        $region15: #{tpu_custom_call.1} parent=11 // pred_region
          %123 = vsyncadd [#allocation3], 0
          %s124 = sshll.u32 %s0, 4
          %s125 = int_to_ptr.hbm [resolvable:$true] %s124
          %s126 = sshll.u32 [#allocation2], 4
          %s127 = int_to_ptr.vmem [resolvable:$true] %s126
          %132 = dma.hbm_to_vmem [thread:$0]  %s125, 512, %s127, [#allocation3], 128, 128, 8
        $region16: #{tpu_custom_call.1} parent=11 // pred_fallthru
          _
      $region12: #{tpu_custom_call.1} parent=5 // pred_fallthru
        _
      %p133 = scmp.lt.s32.totalorder %s15, 2
      // Predicated region
      $region17: #{tpu_custom_call.1} parent=5 // pred_check
        %p134 = pneg %p133
      $region18: #{tpu_custom_call.1} parent=5 // pred_check_branch
        %136 = sbr.rel (%p134) target = $region20
      $region19: #{tpu_custom_call.1} parent=5 // pred_region
        // Predicated region
        $region21: #{tpu_custom_call.1} parent=19 // pred_check
          %p137 = pneg %p70
        $region22: #{tpu_custom_call.1} parent=19 // pred_check_branch
          %139 = sbr.rel (%p137) target = $region24
        $region23: #{tpu_custom_call.1} parent=19 // pred_region
          %s140 = sand.u32 %s60, 1
          %s141 = scalar_lea.sflag [#allocation6], %s140
          %s142 = sand.u32 %s60, 1
          %s143 = smul.addr %s142, 64
          %s144 = scalar_lea.vmem [#allocation5], %s143
          %s145 = smul.u32 2, %s23
          %147 = vsyncadd %s141, 0
          %s148 = smul.addr %s22, 8
          %s149 = sadd.s32 %s145, %s148
          %s150 = smul.addr %s149, 8
          %s151 = scalar_lea.hbm %s1, %s150
          %s152 = sshll.u32 %s151, 4
          %s153 = int_to_ptr.hbm [resolvable:$true] %s152
          %s154 = sshll.u32 %s144, 4
          %s155 = int_to_ptr.vmem [resolvable:$true] %s154
          %160 = dma.hbm_to_vmem [thread:$0]  %s153, 1024, %s155, %s141, 256, 256, 16
        $region24: #{tpu_custom_call.1} parent=19 // pred_fallthru
          _
      $region20: #{tpu_custom_call.1} parent=5 // pred_fallthru
        _
      %p161 = scmp.le.s32.totalorder 1, %s15
      %p162 = scmp.lt.s32.totalorder %s15, 3
      %p163 = pnand %p161, %p162
      %p164 = pneg %p163
      // Predicated region
      $region25: #{tpu_custom_call.1} parent=5 // pred_check
        _
      $region26: #{tpu_custom_call.1} parent=5 // pred_check_branch
        %166 = sbr.rel (%p163) target = $region28
      $region27: #{tpu_custom_call.1} parent=5 // pred_region
        %s167 = ssub.s32 %s15, 1
        // Predicated region
        $region29: #{tpu_custom_call.1} parent=27 // pred_check
          %p168 = pneg %p48
        $region30: #{tpu_custom_call.1} parent=27 // pred_check_branch
          %170 = sbr.rel (%p168) target = $region32
        $region31: #{tpu_custom_call.1} parent=27 // pred_region
          %172 = dma.done [#allocation3], 512
        $region32: #{tpu_custom_call.1} parent=27 // pred_fallthru
          _
        %s173 = sand.u32 %s63, 1
        %s174 = scalar_lea.sflag [#allocation6], %s173
        %s175 = sand.u32 %s63, 1
        %s176 = smul.addr %s175, 64
        %s177 = scalar_lea.vmem [#allocation5], %s176
        // Predicated region
        $region33: #{tpu_custom_call.1} parent=27 // pred_check
          %p178 = pneg %p76
        $region34: #{tpu_custom_call.1} parent=27 // pred_check_branch
          %180 = sbr.rel (%p178) target = $region36
        $region35: #{tpu_custom_call.1} parent=27 // pred_region
          %182 = dma.done %s174, 1024
        $region36: #{tpu_custom_call.1} parent=27 // pred_fallthru
          _
        %p183 = pneg %p48
        %p184 = pneg %p45
        %s185 = sand.u32 %s63, 1
        %s186 = scalar_lea.sflag [#allocation6], %s185
        %s187 = sand.u32 %s63, 1
        %s188 = smul.addr %s187, 64
        %s189 = scalar_lea.vmem [#allocation5], %s188
        %p190 = pneg %p76
        %p191 = pneg %p73
        %p192 = pneg %p104
        %p193 = pneg %p101
        %s194 = sand.u32 %s91, 1
        %s195 = scalar_lea.sflag [#allocation4], %s194
        %s196 = sand.u32 %s91, 1
        %s197 = smul.addr %s196, 32
        %s198 = scalar_lea.vmem [#allocation7], %s197
        %s199 = smul.u32 2, %s25
        %s200 = smul.u32 2, %s25
        %v201 = vld [vmem:[#allocation2] sm:$0xff]
        %v202 = vld [vmem:[#allocation2 + $0x8] sm:$0xff]
        %v203 = vld [vmem:[#allocation2 + $0x10] sm:$0xff]
        %v204 = vld [vmem:[#allocation2 + $0x18] sm:$0xff]
        %v205 = vld [vmem:[%s177] sm:$0xff]
        %v206 = vld [vmem:[%s177 + $0x8] sm:$0xff]
        %v207 = vld [vmem:[%s177 + $0x10] sm:$0xff]
        %v208 = vld [vmem:[%s177 + $0x18] sm:$0xff]
        %v209 = vld [vmem:[%s177 + $0x20] sm:$0xff]
        %v210 = vld [vmem:[%s177 + $0x28] sm:$0xff]
        %v211 = vld [vmem:[%s177 + $0x30] sm:$0xff]
        %v212 = vld [vmem:[%s177 + $0x38] sm:$0xff]
        %vm213 = vcmask 261120
        %v215 = vsel %vm213, %v201, 0
        %v218 = vsel %vm213, %v202, 0
        %v221 = vsel %vm213, %v203, 0
        %v224 = vsel %vm213, %v204, 0
        %226 = vmatpush.msra.mxu0 0.0
        %227 = vmatpush.msra.mxu0 0.0
        %228 = vmatpush.msra.mxu0 0.0
        %229 = vmatpush.msra.mxu0 0.0
        %230 = vmatpush.msra.mxu0 0.0
        %231 = vmatpush.msra.mxu0 0.0
        %232 = vmatpush.msra.mxu0 0.0
        %233 = vmatpush.msra.mxu0 0.0
        %234 = vmatpush.msra.mxu0 0.0
        %235 = vmatpush.msra.mxu0 0.0
        %236 = vmatpush.msra.mxu0 0.0
        %237 = vmatpush.msra.mxu0 0.0
        %238 = vmatpush.msra.mxu0 %v211
        %239 = vmatpush.msra.mxu0 %v209
        %240 = vmatpush.msra.mxu0 %v207
        %241 = vmatpush.msra.mxu0 %v205
        %242 = vmatmul.f32.gmra.mxu0 %v215
        %v243 = vpop.f32.mrf.mxu0
        %v244 = vadd.f32 0.0, %v243
        %245 = vmatmul.f32.gmra.mxu0 %v218
        %v246 = vpop.f32.mrf.mxu0
        %v247 = vadd.f32 0.0, %v246
        %248 = vmatmul.f32.gmra.mxu0 %v221
        %v249 = vpop.f32.mrf.mxu0
        %v250 = vadd.f32 0.0, %v249
        %251 = vmatmul.f32.gmra.mxu0 %v224
        %v252 = vpop.f32.mrf.mxu0
        %v253 = vadd.f32 0.0, %v252
        %254 = vdwg.mxu0
        %255 = vmatpush.msra.mxu0 0.0
        %256 = vmatpush.msra.mxu0 0.0
        %257 = vmatpush.msra.mxu0 0.0
        %258 = vmatpush.msra.mxu0 0.0
        %259 = vmatpush.msra.mxu0 0.0
        %260 = vmatpush.msra.mxu0 0.0
        %261 = vmatpush.msra.mxu0 0.0
        %262 = vmatpush.msra.mxu0 0.0
        %263 = vmatpush.msra.mxu0 0.0
        %264 = vmatpush.msra.mxu0 0.0
        %265 = vmatpush.msra.mxu0 0.0
        %266 = vmatpush.msra.mxu0 0.0
        %267 = vmatpush.msra.mxu0 %v212
        %268 = vmatpush.msra.mxu0 %v210
        %269 = vmatpush.msra.mxu0 %v208
        %270 = vmatpush.msra.mxu0 %v206
        %271 = vmatmul.f32.gmra.mxu0 %v215
        %v272 = vpop.f32.mrf.mxu0
        %v273 = vadd.f32 0.0, %v272
        %274 = vmatmul.f32.gmra.mxu0 %v218
        %v275 = vpop.f32.mrf.mxu0
        %v276 = vadd.f32 0.0, %v275
        %277 = vmatmul.f32.gmra.mxu0 %v221
        %v278 = vpop.f32.mrf.mxu0
        %v279 = vadd.f32 0.0, %v278
        %280 = vmatmul.f32.gmra.mxu0 %v224
        %v281 = vpop.f32.mrf.mxu0
        %v282 = vadd.f32 0.0, %v281
        %283 = vdwg.mxu0
        %v284 = vpack.c.bf16 %v273, %v244
        %v285 = vpack.c.bf16 %v276, %v247
        %v286 = vpack.c.bf16 %v279, %v250
        %v287 = vpack.c.bf16 %v282, %v253
        %288 = vst [vmem:[%s198] sm:$0xff] %v284
        %289 = vst [vmem:[%s198 + $0x8] sm:$0xff] %v285
        %290 = vst [vmem:[%s198 + $0x10] sm:$0xff] %v286
        %291 = vst [vmem:[%s198 + $0x18] sm:$0xff] %v287
        %s292 = sand.u32 %s91, 1
        %s293 = scalar_lea.sflag [#allocation4], %s292
        %s294 = sand.u32 %s91, 1
        %s295 = smul.addr %s294, 32
        %s296 = scalar_lea.vmem [#allocation7], %s295
        // Predicated region
        $region37: #{tpu_custom_call.1} parent=27 // pred_check
          %p297 = pneg %p101
        $region38: #{tpu_custom_call.1} parent=27 // pred_check_branch
          %299 = sbr.rel (%p297) target = $region40
        $region39: #{tpu_custom_call.1} parent=27 // pred_region
          %s300 = smul.u32 2, %s25
          %302 = vsyncadd %s293, 0
          %s303 = smul.addr %s24, 8
          %s304 = sadd.s32 %s300, %s303
          %s305 = smul.addr %s304, 4
          %s306 = scalar_lea.hbm %s2, %s305
          %s307 = sshll.u32 %s296, 4
          %s308 = int_to_ptr.vmem [resolvable:$true] %s307
          %s309 = sshll.u32 %s306, 4
          %s310 = int_to_ptr.hbm [resolvable:$true] %s309
          %315 = dma.vmem_to_hbm [thread:$0]  %s308, 512, %s310, %s293, 128, 128, 8
        $region40: #{tpu_custom_call.1} parent=27 // pred_fallthru
          _
      $region28: #{tpu_custom_call.1} parent=5 // pred_fallthru
        _
      %p316 = scmp.le.s32.totalorder 2, %s15
      // Predicated region
      $region41: #{tpu_custom_call.1} parent=5 // pred_check
        %p317 = pneg %p316
      $region42: #{tpu_custom_call.1} parent=5 // pred_check_branch
        %319 = sbr.rel (%p317) target = $region44
      $region43: #{tpu_custom_call.1} parent=5 // pred_region
        %s320 = ssub.s32 %s15, 2
        // Predicated region
        $region45: #{tpu_custom_call.1} parent=43 // pred_check
          %p321 = pneg %p107
        $region46: #{tpu_custom_call.1} parent=43 // pred_check_branch
          %323 = sbr.rel (%p321) target = $region48
        $region47: #{tpu_custom_call.1} parent=43 // pred_region
          %s324 = sand.u32 %s92, 1
          %s325 = scalar_lea.sflag [#allocation4], %s324
          %s326 = sand.u32 %s92, 1
          %s327 = smul.addr %s326, 32
          %s328 = scalar_lea.vmem [#allocation7], %s327
          %330 = dma.done %s325, 512
        $region48: #{tpu_custom_call.1} parent=43 // pred_fallthru
          _
      $region44: #{tpu_custom_call.1} parent=5 // pred_fallthru
        _
    $region6: #{tpu_custom_call.1} parent=1 // loop_footer
      %s19 = sadd.s32 1, %s15
    $region7: #{tpu_custom_call.1} parent=1 // loop_footer_branch
      %14 = sbr.rel target = $region3
    $region8: #{tpu_custom_call.1} parent=1 // loop_exit
      _
    %331 = vsyncpa [#allocation3], 1
    %s332 = scalar_lea.sflag [#allocation3], 1
    %333 = vsyncpa %s332, 1
    %334 = vsyncpa [#allocation6], 1
    %s335 = scalar_lea.sflag [#allocation6], 1
    %336 = vsyncpa %s335, 1
    %337 = vsyncpa [#allocation4], 1
    %s338 = scalar_lea.sflag [#allocation4], 1
    %339 = vsyncpa %s338, 1

</llo_original>
